<compile_context>
chip_gen: v5e
topology: v5e:2x2
jax: 0.10.0
libtpu: 0.0.40
codegen_flags: <defaults>
</compile_context>

<pallas_src>
import functools

import jax
import jax.numpy as jnp
from jax.experimental import pallas as pl
from jax.experimental.pallas import tpu as pltpu

# ---------------- model constants (from the PyTorch module) ----------------
N_CTX = 2
N_STATES = 16
STATE_DIM = 32     # LSTM input dim
HIDDEN_DIM = 128   # LSTM hidden dim
OUTPUT_DIM = 2
PAD_OUT = 128      # lane-dense padded head width (sliced to OUTPUT_DIM in wrapper)
SEQ_LEN = 3        # [ctx, f1, f2] (ctx_order == 'first')
GATE_ROWS = 32     # N_CTX + N_STATES (=18) padded up to a sublane multiple
CTX_SCALE = 1.0
CTX_ORDER = "first"


# ---------------------------- Pallas kernel --------------------------------
def _rnn_kernel(ctx_first, idx_ref, gate_tab_ref, w_slab_ref, out_ref):
    """Fused embedding gather + 3-step LSTM recurrence + padded Linear head.

    idx_ref      : (3B, 1) int32  -- rows [ctx | N_CTX+f1 | N_CTX+f2]
    gate_tab_ref : (GATE_ROWS, 4H) f32 -- [ctx_emb*scale ; face_emb] @ W_ih^T + (b_ih+b_hh)
    w_slab_ref   : (H+8, 4H+PAD_OUT) f32
                     [:H,      :4H       ] = W_hh^T
                     [:H,   4H:4H+PAD_OUT] = W_out^T (zero-padded past OUTPUT_DIM)
                     [H:H+1,4H:4H+PAD_OUT] = b_out   (zero-padded)
    out_ref      : (B, 2H + PAD_OUT) f32 -- [hidden_f1 | hidden_f2 | logits_pad]
    """
    H = HIDDEN_DIM
    three_b = idx_ref.shape[0]
    B = three_b // 3

    # --- fused gather + input projection + bias: ONE one-hot MXU matmul ----
    iota = jax.lax.broadcasted_iota(jnp.int32, (three_b, GATE_ROWS), 1)
    onehot = (idx_ref[...] == iota).astype(jnp.float32)
    xp_all = jnp.dot(onehot, gate_tab_ref[...],
                     preferred_element_type=jnp.float32)       # (3B, 4H)
    ctx_xp = xp_all[0 * B:1 * B]
    f1_xp = xp_all[1 * B:2 * B]
    f2_xp = xp_all[2 * B:3 * B]

    # --- weights (static, lane-tile-aligned ref slices) ---------------------
    w_hh = w_slab_ref[0:H, 0:4 * H]                              # (H, 4H)
    w_out = w_slab_ref[0:H, 4 * H:4 * H + PAD_OUT]               # (H, PAD_OUT)
    b_out = w_slab_ref[H:H + 1, 4 * H:4 * H + PAD_OUT]           # (1, PAD_OUT)

    if ctx_first:
        xps = (ctx_xp, f1_xp, f2_xp)
        f1_pos, f2_pos = 1, 2
    else:  # ctx_order == 'last'
        xps = (f1_xp, f2_xp, ctx_xp)
        f1_pos, f2_pos = 0, 1

    # --- statically unrolled recurrence; h / c live in vregs ----------------
    h = None
    c = None
    hs = []
    for t, xp in enumerate(xps):
        if t == 0:
            gates = xp                                   # h0 = 0 -> skip h @ W_hh
        else:
            gates = xp + jnp.dot(h, w_hh, preferred_element_type=jnp.float32)
        # PyTorch gate order: i, f, g, o
        i_g = jax.nn.sigmoid(gates[:, 0 * H:1 * H])
        g_g = jnp.tanh(gates[:, 2 * H:3 * H])
        o_g = jax.nn.sigmoid(gates[:, 3 * H:4 * H])
        if t == 0:
            c = i_g * g_g                                # c0 = 0 -> skip f*c
        else:
            f_g = jax.nn.sigmoid(gates[:, 1 * H:2 * H])
            c = f_g * c + i_g * g_g
        h = o_g * jnp.tanh(c)
        hs.append(h)

    logits = jnp.dot(hs[-1], w_out, preferred_element_type=jnp.float32) + b_out

    # --- single lane-dense output slab (all 128-aligned unmasked stores) ----
    out_ref[:, 0 * H:1 * H] = hs[f1_pos]
    out_ref[:, 1 * H:2 * H] = hs[f2_pos]
    out_ref[:, 2 * H:2 * H + PAD_OUT] = logits


def rnn_fused_pallas(idx_all, gate_tab, w_slab, *, ctx_first):
    """idx_all: (3B, 1) int32.  Returns (B, 2H + PAD_OUT) f32 slab."""
    B = idx_all.shape[0] // 3
    vmem = pl.BlockSpec(memory_space=pltpu.MemorySpace.VMEM)
    kernel = functools.partial(_rnn_kernel, ctx_first)
    return pl.pallas_call(
        kernel,
        out_shape=jax.ShapeDtypeStruct((B, 2 * HIDDEN_DIM + PAD_OUT), jnp.float32),
        in_specs=[vmem, vmem, vmem],
        out_specs=vmem,
    )(idx_all, gate_tab, w_slab)


# ---------------------------- parameter init --------------------------------
def _xavier_normal(key, shape):
    fan_out, fan_in = shape
    std = (2.0 / (fan_in + fan_out)) ** 0.5
    return std * jax.random.normal(key, shape, dtype=jnp.float32)


def _uniform(key, shape, bound):
    return jax.random.uniform(key, shape, jnp.float32, -bound, bound)


def init_params(key):
    """PyTorch-format parameters (same init scheme as the nn.Module)."""
    ks = jax.random.split(key, 8)
    k_lstm = 1.0 / (HIDDEN_DIM ** 0.5)
    k_out = 1.0 / (HIDDEN_DIM ** 0.5)
    return {
        "ctx_emb": _xavier_normal(ks[0], (N_CTX, STATE_DIM)),
        "face_emb": _xavier_normal(ks[1], (N_STATES, STATE_DIM)),
        "w_ih": _uniform(ks[2], (4 * HIDDEN_DIM, STATE_DIM), k_lstm),
        "w_hh": _uniform(ks[3], (4 * HIDDEN_DIM, HIDDEN_DIM), k_lstm),
        "b_ih": _uniform(ks[4], (4 * HIDDEN_DIM,), k_lstm),
        "b_hh": _uniform(ks[5], (4 * HIDDEN_DIM,), k_lstm),
        "w_out": _uniform(ks[6], (OUTPUT_DIM, HIDDEN_DIM), k_out),
        "b_out": _uniform(ks[7], (OUTPUT_DIM,), k_out),
    }


def prepare_kernel_params(params):
    """One-time conversion to kernel-ready (fused / transposed / padded) form."""
    H = HIDDEN_DIM
    w_ih_t = params["w_ih"].T                                     # (D, 4H)
    bias = params["b_ih"] + params["b_hh"]                        # (4H,)

    # Bias folded into the gate tables (one-hot row sums to exactly 1).  Kept in f32.
    ctx_gate = (CTX_SCALE * params["ctx_emb"]) @ w_ih_t + bias    # (N_CTX, 4H)
    face_gate = params["face_emb"] @ w_ih_t + bias                # (N_STATES, 4H)
    gate_tab = jnp.zeros((GATE_ROWS, 4 * H), jnp.float32)
    gate_tab = gate_tab.at[:N_CTX].set(ctx_gate)
    gate_tab = gate_tab.at[N_CTX:N_CTX + N_STATES].set(face_gate)

    # Single weight slab: [W_hh^T | W_out^T(pad)] with b_out on row H.
    w_slab = jnp.zeros((H + 8, 4 * H + PAD_OUT), jnp.float32)
    w_slab = w_slab.at[:H, :4 * H].set(params["w_hh"].T)
    w_slab = w_slab.at[:H, 4 * H:4 * H + OUTPUT_DIM].set(params["w_out"].T)
    w_slab = w_slab.at[H, 4 * H:4 * H + OUTPUT_DIM].set(params["b_out"])

    return {"gate_tab": gate_tab, "w_slab": w_slab}


# ------------------------------- forward ------------------------------------
@jax.jit
def rnn_forward(kparams, ctx, f1, f2):
    """Mirrors RNN.forward (use_images=False)."""
    B = ctx.shape[0]
    # Pack the three index vectors into one (3B, 1) slab with table offsets applied.
    idx_all = jnp.concatenate(
        [ctx.astype(jnp.int32),
         f1.astype(jnp.int32) + N_CTX,
         f2.astype(jnp.int32) + N_CTX], axis=0).reshape(3 * B, 1)
    out = rnn_fused_pallas(idx_all, kparams["gate_tab"], kparams["w_slab"],
                           ctx_first=(CTX_ORDER == "first"))
    hf1 = out[:, 0:HIDDEN_DIM]
    hf2 = out[:, HIDDEN_DIM:2 * HIDDEN_DIM]
    logits = out[:, 2 * HIDDEN_DIM:2 * HIDDEN_DIM + OUTPUT_DIM]
    return logits, {"hidden_f1": hf1, "hidden_f2": hf2}


# ------------------------------- reference ----------------------------------
def rnn_forward_ref(params, ctx, f1, f2):
    """Pure-JAX f32 reference (same math as torch.nn.LSTM)."""
    ctx_embed = CTX_SCALE * params["ctx_emb"][ctx]
    f1_embed = params["face_emb"][f1]
    f2_embed = params["face_emb"][f2]
    if CTX_ORDER == "first":
        x = jnp.stack([ctx_embed, f1_embed, f2_embed], axis=0)
        f1_ind, f2_ind = 1, 2
    else:
        x = jnp.stack([f1_embed, f2_embed, ctx_embed], axis=0)
        f1_ind, f2_ind = 0, 1
    H = HIDDEN_DIM
    B = ctx.shape[0]
    h = jnp.zeros((B, H), jnp.float32)
    c = jnp.zeros((B, H), jnp.float32)
    outs = []
    for t in range(SEQ_LEN):
        g = (x[t] @ params["w_ih"].T + h @ params["w_hh"].T
             + params["b_ih"] + params["b_hh"])
        i = jax.nn.sigmoid(g[:, 0:H])
        f = jax.nn.sigmoid(g[:, H:2 * H])
        gg = jnp.tanh(g[:, 2 * H:3 * H])
        o = jax.nn.sigmoid(g[:, 3 * H:4 * H])
        c = f * c + i * gg
        h = o * jnp.tanh(c)
        outs.append(h)
    lstm_out = jnp.stack(outs, axis=0)
    logits = h @ params["w_out"].T + params["b_out"]
    return logits, {"hidden_f1": lstm_out[f1_ind], "hidden_f2": lstm_out[f2_ind]}


# --------------------------------- main --------------------------------------
if __name__ == "__main__":
    key = jax.random.PRNGKey(0)
    k_params, k_ctx, k_f1, k_f2 = jax.random.split(key, 4)

    params = init_params(k_params)
    kparams = prepare_kernel_params(params)

    B = 8
    ctx = jax.random.randint(k_ctx, (B,), 0, N_CTX, dtype=jnp.int32)
    f1 = jax.random.randint(k_f1, (B,), 0, N_STATES, dtype=jnp.int32)
    f2 = jax.random.randint(k_f2, (B,), 0, N_STATES, dtype=jnp.int32)

    logits, reps = rnn_forward(kparams, ctx, f1, f2)
    jax.block_until_ready((logits, reps))

    # Sanity check vs. pure-JAX f32 reference.
    logits_ref, reps_ref = rnn_forward_ref(params, ctx, f1, f2)
    assert jnp.allclose(logits, logits_ref, atol=2e-2, rtol=2e-2)
    assert jnp.allclose(reps["hidden_f1"], reps_ref["hidden_f1"], atol=2e-2, rtol=2e-2)
    assert jnp.allclose(reps["hidden_f2"], reps_ref["hidden_f2"], atol=2e-2, rtol=2e-2)
    assert logits.shape == (B, OUTPUT_DIM)
    assert reps["hidden_f1"].shape == (B, HIDDEN_DIM)
    assert reps["hidden_f2"].shape == (B, HIDDEN_DIM)

    # TODO(synk): use_images=True (CNN face embedding) path is not implemented.
    print("KERNEL_OK")
</pallas_src>

<mosaic_0001>
module attributes {stable_mosaic.version = 11 : i64} {
  func.func @_rnn_kernel(%arg0: memref<24x1xi32, #tpu.memory_space<vmem>>, %arg1: memref<32x512xf32, #tpu.memory_space<vmem>>, %arg2: memref<136x640xf32, #tpu.memory_space<vmem>>, %arg3: memref<8x384xf32, #tpu.memory_space<vmem>>) attributes {dimension_semantics = [], scalar_prefetch = 0 : i64, scratch_operands = 0 : i64, tpu.core_type = #tpu.core_type<tc>} {
    %0 = tpu.iota {dimensions = array<i32: 1>} : vector<24x32xi32>
    %c0 = arith.constant 0 : index
    %c0_0 = arith.constant 0 : index
    %1 = vector.load %arg0[%c0, %c0_0] : memref<24x1xi32, #tpu.memory_space<vmem>>, vector<24x1xi32>
    %2 = vector.broadcast %1 : vector<24x1xi32> to vector<24x32xi32>
    %3 = arith.cmpi eq, %2, %0 : vector<24x32xi32>
    %4 = arith.extui %3 : vector<24x32xi1> to vector<24x32xi32>
    %5 = arith.sitofp %4 : vector<24x32xi32> to vector<24x32xf32>
    %c0_1 = arith.constant 0 : index
    %c0_2 = arith.constant 0 : index
    %6 = vector.load %arg1[%c0_1, %c0_2] : memref<32x512xf32, #tpu.memory_space<vmem>>, vector<32x512xf32>
    %cst = arith.constant dense<0.000000e+00> : vector<24x512xf32>
    %7 = tpu.matmul %5, %6, %cst {dimension_numbers = #tpu.dot_dimension_numbers<[1], [0], [0], [1], [0, 0, 1, 1], [], []>} : vector<24x32xf32>, vector<32x512xf32>, vector<24x512xf32> -> vector<24x512xf32>
    %8 = vector.extract_strided_slice %7 {offsets = [0, 0], sizes = [8, 512], strides = [1, 1]} : vector<24x512xf32> to vector<8x512xf32>
    %9 = vector.extract_strided_slice %7 {offsets = [8, 0], sizes = [8, 512], strides = [1, 1]} : vector<24x512xf32> to vector<8x512xf32>
    %10 = vector.extract_strided_slice %7 {offsets = [16, 0], sizes = [8, 512], strides = [1, 1]} : vector<24x512xf32> to vector<8x512xf32>
    %c0_3 = arith.constant 0 : index
    %c0_4 = arith.constant 0 : index
    %11 = vector.load %arg2[%c0_3, %c0_4] : memref<136x640xf32, #tpu.memory_space<vmem>>, vector<128x512xf32>
    %c0_5 = arith.constant 0 : index
    %c512 = arith.constant 512 : index
    %12 = vector.load %arg2[%c0_5, %c512] : memref<136x640xf32, #tpu.memory_space<vmem>>, vector<128x128xf32>
    %c128 = arith.constant 128 : index
    %c512_6 = arith.constant 512 : index
    %13 = vector.load %arg2[%c128, %c512_6] : memref<136x640xf32, #tpu.memory_space<vmem>>, vector<1x128xf32>
    %14 = vector.extract_strided_slice %8 {offsets = [0, 0], sizes = [8, 128], strides = [1, 1]} : vector<8x512xf32> to vector<8x128xf32>
    %15 = arith.negf %14 : vector<8x128xf32>
    %16 = math.exp %15 : vector<8x128xf32>
    %cst_7 = arith.constant 1.000000e+00 : f32
    %17 = vector.broadcast %cst_7 : f32 to vector<8x128xf32>
    %18 = arith.addf %17, %16 : vector<8x128xf32>
    %19 = arith.divf %17, %18 : vector<8x128xf32>
    %20 = vector.extract_strided_slice %8 {offsets = [0, 256], sizes = [8, 128], strides = [1, 1]} : vector<8x512xf32> to vector<8x128xf32>
    %21 = math.tanh %20 : vector<8x128xf32>
    %22 = vector.extract_strided_slice %8 {offsets = [0, 384], sizes = [8, 128], strides = [1, 1]} : vector<8x512xf32> to vector<8x128xf32>
    %23 = arith.negf %22 : vector<8x128xf32>
    %24 = math.exp %23 : vector<8x128xf32>
    %cst_8 = arith.constant 1.000000e+00 : f32
    %25 = vector.broadcast %cst_8 : f32 to vector<8x128xf32>
    %26 = arith.addf %25, %24 : vector<8x128xf32>
    %27 = arith.divf %25, %26 : vector<8x128xf32>
    %28 = arith.mulf %19, %21 : vector<8x128xf32>
    %29 = math.tanh %28 : vector<8x128xf32>
    %30 = arith.mulf %27, %29 : vector<8x128xf32>
    %cst_9 = arith.constant dense<0.000000e+00> : vector<8x512xf32>
    %31 = tpu.matmul %30, %11, %cst_9 {dimension_numbers = #tpu.dot_dimension_numbers<[1], [0], [0], [1], [0, 0, 1, 1], [], []>} : vector<8x128xf32>, vector<128x512xf32>, vector<8x512xf32> -> vector<8x512xf32>
    %32 = arith.addf %9, %31 : vector<8x512xf32>
    %33 = vector.extract_strided_slice %32 {offsets = [0, 0], sizes = [8, 128], strides = [1, 1]} : vector<8x512xf32> to vector<8x128xf32>
    %34 = arith.negf %33 : vector<8x128xf32>
    %35 = math.exp %34 : vector<8x128xf32>
    %cst_10 = arith.constant 1.000000e+00 : f32
    %36 = vector.broadcast %cst_10 : f32 to vector<8x128xf32>
    %37 = arith.addf %36, %35 : vector<8x128xf32>
    %38 = arith.divf %36, %37 : vector<8x128xf32>
    %39 = vector.extract_strided_slice %32 {offsets = [0, 256], sizes = [8, 128], strides = [1, 1]} : vector<8x512xf32> to vector<8x128xf32>
    %40 = math.tanh %39 : vector<8x128xf32>
    %41 = vector.extract_strided_slice %32 {offsets = [0, 384], sizes = [8, 128], strides = [1, 1]} : vector<8x512xf32> to vector<8x128xf32>
    %42 = arith.negf %41 : vector<8x128xf32>
    %43 = math.exp %42 : vector<8x128xf32>
    %cst_11 = arith.constant 1.000000e+00 : f32
    %44 = vector.broadcast %cst_11 : f32 to vector<8x128xf32>
    %45 = arith.addf %44, %43 : vector<8x128xf32>
    %46 = arith.divf %44, %45 : vector<8x128xf32>
    %47 = vector.extract_strided_slice %32 {offsets = [0, 128], sizes = [8, 128], strides = [1, 1]} : vector<8x512xf32> to vector<8x128xf32>
    %48 = arith.negf %47 : vector<8x128xf32>
    %49 = math.exp %48 : vector<8x128xf32>
    %cst_12 = arith.constant 1.000000e+00 : f32
    %50 = vector.broadcast %cst_12 : f32 to vector<8x128xf32>
    %51 = arith.addf %50, %49 : vector<8x128xf32>
    %52 = arith.divf %50, %51 : vector<8x128xf32>
    %53 = arith.mulf %52, %28 : vector<8x128xf32>
    %54 = arith.mulf %38, %40 : vector<8x128xf32>
    %55 = arith.addf %53, %54 : vector<8x128xf32>
    %56 = math.tanh %55 : vector<8x128xf32>
    %57 = arith.mulf %46, %56 : vector<8x128xf32>
    %cst_13 = arith.constant dense<0.000000e+00> : vector<8x512xf32>
    %58 = tpu.matmul %57, %11, %cst_13 {dimension_numbers = #tpu.dot_dimension_numbers<[1], [0], [0], [1], [0, 0, 1, 1], [], []>} : vector<8x128xf32>, vector<128x512xf32>, vector<8x512xf32> -> vector<8x512xf32>
    %59 = arith.addf %10, %58 : vector<8x512xf32>
    %60 = vector.extract_strided_slice %59 {offsets = [0, 0], sizes = [8, 128], strides = [1, 1]} : vector<8x512xf32> to vector<8x128xf32>
    %61 = arith.negf %60 : vector<8x128xf32>
    %62 = math.exp %61 : vector<8x128xf32>
    %cst_14 = arith.constant 1.000000e+00 : f32
    %63 = vector.broadcast %cst_14 : f32 to vector<8x128xf32>
    %64 = arith.addf %63, %62 : vector<8x128xf32>
    %65 = arith.divf %63, %64 : vector<8x128xf32>
    %66 = vector.extract_strided_slice %59 {offsets = [0, 256], sizes = [8, 128], strides = [1, 1]} : vector<8x512xf32> to vector<8x128xf32>
    %67 = math.tanh %66 : vector<8x128xf32>
    %68 = vector.extract_strided_slice %59 {offsets = [0, 384], sizes = [8, 128], strides = [1, 1]} : vector<8x512xf32> to vector<8x128xf32>
    %69 = arith.negf %68 : vector<8x128xf32>
    %70 = math.exp %69 : vector<8x128xf32>
    %cst_15 = arith.constant 1.000000e+00 : f32
    %71 = vector.broadcast %cst_15 : f32 to vector<8x128xf32>
    %72 = arith.addf %71, %70 : vector<8x128xf32>
    %73 = arith.divf %71, %72 : vector<8x128xf32>
    %74 = vector.extract_strided_slice %59 {offsets = [0, 128], sizes = [8, 128], strides = [1, 1]} : vector<8x512xf32> to vector<8x128xf32>
    %75 = arith.negf %74 : vector<8x128xf32>
    %76 = math.exp %75 : vector<8x128xf32>
    %cst_16 = arith.constant 1.000000e+00 : f32
    %77 = vector.broadcast %cst_16 : f32 to vector<8x128xf32>
    %78 = arith.addf %77, %76 : vector<8x128xf32>
    %79 = arith.divf %77, %78 : vector<8x128xf32>
    %80 = arith.mulf %79, %55 : vector<8x128xf32>
    %81 = arith.mulf %65, %67 : vector<8x128xf32>
    %82 = arith.addf %80, %81 : vector<8x128xf32>
    %83 = math.tanh %82 : vector<8x128xf32>
    %84 = arith.mulf %73, %83 : vector<8x128xf32>
    %cst_17 = arith.constant dense<0.000000e+00> : vector<8x128xf32>
    %85 = tpu.matmul %84, %12, %cst_17 {dimension_numbers = #tpu.dot_dimension_numbers<[1], [0], [0], [1], [0, 0, 1, 1], [], []>} : vector<8x128xf32>, vector<128x128xf32>, vector<8x128xf32> -> vector<8x128xf32>
    %86 = vector.broadcast %13 : vector<1x128xf32> to vector<8x128xf32>
    %87 = arith.addf %85, %86 : vector<8x128xf32>
    %c0_18 = arith.constant 0 : index
    %c0_19 = arith.constant 0 : index
    %88 = vector.load %arg3[%c0_18, %c0_19] : memref<8x384xf32, #tpu.memory_space<vmem>>, vector<8x128xf32>
    tpu.vector_store %arg3[%c0_18, %c0_19], %57 {strides = array<i32>} : memref<8x384xf32, #tpu.memory_space<vmem>>, vector<8x128xf32>,
    %c0_20 = arith.constant 0 : index
    %c128_21 = arith.constant 128 : index
    %89 = vector.load %arg3[%c0_20, %c128_21] : memref<8x384xf32, #tpu.memory_space<vmem>>, vector<8x128xf32>
    tpu.vector_store %arg3[%c0_20, %c128_21], %84 {strides = array<i32>} : memref<8x384xf32, #tpu.memory_space<vmem>>, vector<8x128xf32>,
    %c0_22 = arith.constant 0 : index
    %c256 = arith.constant 256 : index
    %90 = vector.load %arg3[%c0_22, %c256] : memref<8x384xf32, #tpu.memory_space<vmem>>, vector<8x128xf32>
    tpu.vector_store %arg3[%c0_22, %c256], %87 {strides = array<i32>} : memref<8x384xf32, #tpu.memory_space<vmem>>, vector<8x128xf32>,
    return
  }
}

</mosaic_0001>

<llo_original>
// kernel: rnn_forward.1
$region0: #{rnn_forward.1}
  #allocation0 [shape = 'u32[]', space=smem, size = 0x4, offset = 0x4, fixed_abs, tag = 'smem constant byte address 0x4 - core index']
  #allocation1 [shape = 'u32[72,128]{1,0:T(1,128)}', space=vmem, size = 0x9000, scoped, tag = 'internal scratch']
  %s0 = inlined_call_operand.vmem [shape: s32[24,1], index: 0, kind: input, shape index: {}]
  %s1 = inlined_call_operand.hbm [shape: f32[32,512], index: 1, kind: input, shape index: {}]
  %s2 = inlined_call_operand.hbm [shape: f32[136,640], index: 2, kind: input, shape index: {}]
  %s3 = inlined_call_operand.vmem [shape: f32[8,384], index: 3, kind: output, shape index: {}]
  %s4 = sld [smem:[#allocation0]]
  $region30: #{rnn_forward.1} parent=0
    _
  %s6 = ssub.s32 1, %s4
  %s7 = scalar_select 0, %s6, %s4
  $region1: #{rnn_forward.1} parent=0
    #allocation2 [shape = 'u8[65536]{0}', space=vmem, size = 0x10000, scoped, tag = 'input window, operand 1, single buffered']
    #allocation3 [shape = 's32[1]{0}', space=sflag, size = 0x4, scoped, tag = 'scoped memory for rnn_forward.1']
    #allocation4 [shape = 'u8[348160]{0}', space=vmem, size = 0x55000, scoped, tag = 'input window, operand 2, single buffered']
    #allocation5 [shape = 's32[1]{0}', space=sflag, size = 0x4, scoped, tag = 'scoped memory for rnn_forward.1']
    %8 = vsyncpa [#allocation3], 0
    %9 = vsyncpa [#allocation5], 0
    // Predicated region
    $region2: #{rnn_forward.1} parent=1 // pred_check
      _
    $region3: #{rnn_forward.1} parent=1 // pred_check_branch
      %11 = sbr.rel (0) target = $region5
    $region4: #{rnn_forward.1} parent=1 // pred_region
      _
    $region5: #{rnn_forward.1} parent=1 // pred_fallthru
      _
    // Predicated region
    $region6: #{rnn_forward.1} parent=1 // pred_check
      _
    $region7: #{rnn_forward.1} parent=1 // pred_check_branch
      %13 = sbr.rel (0) target = $region9
    $region8: #{rnn_forward.1} parent=1 // pred_region
      %15 = vsyncadd [#allocation3], 0
      %s16 = sshll.u32 %s1, 4
      %s17 = int_to_ptr.hbm [resolvable:$true] %s16
      %s18 = sshll.u32 [#allocation2], 4
      %s19 = int_to_ptr.vmem [resolvable:$true] %s18
      %24 = dma.hbm_to_vmem [thread:$0]  %s17, 2048, %s19, [#allocation3], 512, 512, 32
    $region9: #{rnn_forward.1} parent=1 // pred_fallthru
      _
    // Predicated region
    $region10: #{rnn_forward.1} parent=1 // pred_check
      _
    $region11: #{rnn_forward.1} parent=1 // pred_check_branch
      %26 = sbr.rel (0) target = $region13
    $region12: #{rnn_forward.1} parent=1 // pred_region
      %28 = vsyncadd [#allocation5], 0
      %s29 = sshll.u32 %s2, 4
      %s30 = int_to_ptr.hbm [resolvable:$true] %s29
      %s31 = sshll.u32 [#allocation4], 4
      %s32 = int_to_ptr.vmem [resolvable:$true] %s31
      %37 = dma.hbm_to_vmem [thread:$0]  %s30, 10880, %s32, [#allocation5], 640, 640, 40
    $region13: #{rnn_forward.1} parent=1 // pred_fallthru
      _
    // Predicated region
    $region14: #{rnn_forward.1} parent=1 // pred_check
      _
    $region15: #{rnn_forward.1} parent=1 // pred_check_branch
      %39 = sbr.rel (0) target = $region17
    $region16: #{rnn_forward.1} parent=1 // pred_region
      %41 = dma.done [#allocation3], 2048
    $region17: #{rnn_forward.1} parent=1 // pred_fallthru
      _
    // Predicated region
    $region18: #{rnn_forward.1} parent=1 // pred_check
      _
    $region19: #{rnn_forward.1} parent=1 // pred_check_branch
      %43 = sbr.rel (0) target = $region21
    $region20: #{rnn_forward.1} parent=1 // pred_region
      %45 = dma.done [#allocation5], 10880
    $region21: #{rnn_forward.1} parent=1 // pred_fallthru
      _
    %v46 = vlaneseq
    %v47 = vand.u32 %v46, 127
    %v48 = vld [vmem:[%s0] sm:$0xff]
    %v49 = vld [vmem:[%s0 + $0x8] sm:$0xff]
    %v50 = vld [vmem:[%s0 + $0x10] sm:$0xff]
    %51 = vset.pattern.permute.xlu0 0
    %52 = vperm.xlu0 %51, %v48
    %v53 = vpop.permute.xlu0 %52
    %54 = vset.pattern.permute.xlu0 0
    %55 = vperm.xlu0 %54, %v49
    %v56 = vpop.permute.xlu0 %55
    %57 = vset.pattern.permute.xlu0 0
    %58 = vperm.xlu0 %57, %v50
    %v59 = vpop.permute.xlu0 %58
    %vm60 = vcmp.eq.s32.totalorder %v53, %v47
    %vm61 = vcmp.eq.s32.totalorder %v56, %v47
    %vm62 = vcmp.eq.s32.totalorder %v59, %v47
    %v63 = vsel %vm60, 1, 0
    %v64 = vsel %vm61, 1, 0
    %v65 = vsel %vm62, 1, 0
    %v66 = vcvt.s32.f32 %v63
    %v67 = vcvt.s32.f32 %v64
    %v68 = vcvt.s32.f32 %v65
    %v69 = vld [vmem:[#allocation2] sm:$0xff]
    %v70 = vld [vmem:[#allocation2 + $0x8] sm:$0xff]
    %v71 = vld [vmem:[#allocation2 + $0x10] sm:$0xff]
    %v72 = vld [vmem:[#allocation2 + $0x18] sm:$0xff]
    %v73 = vld [vmem:[#allocation2 + $0x20] sm:$0xff]
    %v74 = vld [vmem:[#allocation2 + $0x28] sm:$0xff]
    %v75 = vld [vmem:[#allocation2 + $0x30] sm:$0xff]
    %v76 = vld [vmem:[#allocation2 + $0x38] sm:$0xff]
    %v77 = vld [vmem:[#allocation2 + $0x40] sm:$0xff]
    %v78 = vld [vmem:[#allocation2 + $0x48] sm:$0xff]
    %v79 = vld [vmem:[#allocation2 + $0x50] sm:$0xff]
    %v80 = vld [vmem:[#allocation2 + $0x58] sm:$0xff]
    %v81 = vld [vmem:[#allocation2 + $0x60] sm:$0xff]
    %v82 = vld [vmem:[#allocation2 + $0x68] sm:$0xff]
    %v83 = vld [vmem:[#allocation2 + $0x70] sm:$0xff]
    %v84 = vld [vmem:[#allocation2 + $0x78] sm:$0xff]
    %vm85 = vcmask 261120
    %v87 = vsel %vm85, %v66, 0
    %v90 = vsel %vm85, %v67, 0
    %v93 = vsel %vm85, %v68, 0
    %95 = vmatpush.msra.mxu0 0.0
    %96 = vmatpush.msra.mxu0 0.0
    %97 = vmatpush.msra.mxu0 0.0
    %98 = vmatpush.msra.mxu0 0.0
    %99 = vmatpush.msra.mxu0 0.0
    %100 = vmatpush.msra.mxu0 0.0
    %101 = vmatpush.msra.mxu0 0.0
    %102 = vmatpush.msra.mxu0 0.0
    %103 = vmatpush.msra.mxu0 0.0
    %104 = vmatpush.msra.mxu0 0.0
    %105 = vmatpush.msra.mxu0 0.0
    %106 = vmatpush.msra.mxu0 0.0
    %107 = vmatpush.msra.mxu0 %v81
    %108 = vmatpush.msra.mxu0 %v77
    %109 = vmatpush.msra.mxu0 %v73
    %110 = vmatpush.msra.mxu0 %v69
    %111 = vmatmul.f32.gmra.mxu0 %v87
    %v112 = vpop.f32.mrf.mxu0
    %v113 = vadd.f32 0.0, %v112
    %114 = vmatmul.f32.gmra.mxu0 %v90
    %v115 = vpop.f32.mrf.mxu0
    %v116 = vadd.f32 0.0, %v115
    %117 = vmatmul.f32.gmra.mxu0 %v93
    %v118 = vpop.f32.mrf.mxu0
    %v119 = vadd.f32 0.0, %v118
    %120 = vdwg.mxu0
    %121 = vmatpush.msra.mxu0 0.0
    %122 = vmatpush.msra.mxu0 0.0
    %123 = vmatpush.msra.mxu0 0.0
    %124 = vmatpush.msra.mxu0 0.0
    %125 = vmatpush.msra.mxu0 0.0
    %126 = vmatpush.msra.mxu0 0.0
    %127 = vmatpush.msra.mxu0 0.0
    %128 = vmatpush.msra.mxu0 0.0
    %129 = vmatpush.msra.mxu0 0.0
    %130 = vmatpush.msra.mxu0 0.0
    %131 = vmatpush.msra.mxu0 0.0
    %132 = vmatpush.msra.mxu0 0.0
    %133 = vmatpush.msra.mxu0 %v82
    %134 = vmatpush.msra.mxu0 %v78
    %135 = vmatpush.msra.mxu0 %v74
    %136 = vmatpush.msra.mxu0 %v70
    %137 = vmatmul.f32.gmra.mxu0 %v87
    %v138 = vpop.f32.mrf.mxu0
    %139 = vmatmul.f32.gmra.mxu0 %v90
    %v140 = vpop.f32.mrf.mxu0
    %v141 = vadd.f32 0.0, %v140
    %142 = vmatmul.f32.gmra.mxu0 %v93
    %v143 = vpop.f32.mrf.mxu0
    %v144 = vadd.f32 0.0, %v143
    %145 = vdwg.mxu0
    %146 = vmatpush.msra.mxu0 0.0
    %147 = vmatpush.msra.mxu0 0.0
    %148 = vmatpush.msra.mxu0 0.0
    %149 = vmatpush.msra.mxu0 0.0
    %150 = vmatpush.msra.mxu0 0.0
    %151 = vmatpush.msra.mxu0 0.0
    %152 = vmatpush.msra.mxu0 0.0
    %153 = vmatpush.msra.mxu0 0.0
    %154 = vmatpush.msra.mxu0 0.0
    %155 = vmatpush.msra.mxu0 0.0
    %156 = vmatpush.msra.mxu0 0.0
    %157 = vmatpush.msra.mxu0 0.0
    %158 = vmatpush.msra.mxu0 %v83
    %159 = vmatpush.msra.mxu0 %v79
    %160 = vmatpush.msra.mxu0 %v75
    %161 = vmatpush.msra.mxu0 %v71
    %162 = vmatmul.f32.gmra.mxu0 %v87
    %v163 = vpop.f32.mrf.mxu0
    %v164 = vadd.f32 0.0, %v163
    %165 = vmatmul.f32.gmra.mxu0 %v90
    %v166 = vpop.f32.mrf.mxu0
    %v167 = vadd.f32 0.0, %v166
    %168 = vmatmul.f32.gmra.mxu0 %v93
    %v169 = vpop.f32.mrf.mxu0
    %v170 = vadd.f32 0.0, %v169
    %171 = vdwg.mxu0
    %172 = vmatpush.msra.mxu0 0.0
    %173 = vmatpush.msra.mxu0 0.0
    %174 = vmatpush.msra.mxu0 0.0
    %175 = vmatpush.msra.mxu0 0.0
    %176 = vmatpush.msra.mxu0 0.0
    %177 = vmatpush.msra.mxu0 0.0
    %178 = vmatpush.msra.mxu0 0.0
    %179 = vmatpush.msra.mxu0 0.0
    %180 = vmatpush.msra.mxu0 0.0
    %181 = vmatpush.msra.mxu0 0.0
    %182 = vmatpush.msra.mxu0 0.0
    %183 = vmatpush.msra.mxu0 0.0
    %184 = vmatpush.msra.mxu0 %v84
    %185 = vmatpush.msra.mxu0 %v80
    %186 = vmatpush.msra.mxu0 %v76
    %187 = vmatpush.msra.mxu0 %v72
    %188 = vmatmul.f32.gmra.mxu0 %v87
    %v189 = vpop.f32.mrf.mxu0
    %v190 = vadd.f32 0.0, %v189
    %191 = vmatmul.f32.gmra.mxu0 %v90
    %v192 = vpop.f32.mrf.mxu0
    %v193 = vadd.f32 0.0, %v192
    %194 = vmatmul.f32.gmra.mxu0 %v93
    %v195 = vpop.f32.mrf.mxu0
    %v196 = vadd.f32 0.0, %v195
    %197 = vdwg.mxu0
    %v198 = vld [vmem:[#allocation4] sm:$0xff]
    %v199 = vld [vmem:[#allocation4 + $0x8] sm:$0xff]
    %v200 = vld [vmem:[#allocation4 + $0x10] sm:$0xff]
    %v201 = vld [vmem:[#allocation4 + $0x18] sm:$0xff]
    %v202 = vld [vmem:[#allocation4 + $0x28] sm:$0xff]
    %v203 = vld [vmem:[#allocation4 + $0x30] sm:$0xff]
    %v204 = vld [vmem:[#allocation4 + $0x38] sm:$0xff]
    %v205 = vld [vmem:[#allocation4 + $0x40] sm:$0xff]
    %v206 = vld [vmem:[#allocation4 + $0x50] sm:$0xff]
    %v207 = vld [vmem:[#allocation4 + $0x58] sm:$0xff]
    %v208 = vld [vmem:[#allocation4 + $0x60] sm:$0xff]
    %v209 = vld [vmem:[#allocation4 + $0x68] sm:$0xff]
    %v210 = vld [vmem:[#allocation4 + $0x78] sm:$0xff]
    %v211 = vld [vmem:[#allocation4 + $0x80] sm:$0xff]
    %v212 = vld [vmem:[#allocation4 + $0x88] sm:$0xff]
    %v213 = vld [vmem:[#allocation4 + $0x90] sm:$0xff]
    %v214 = vld [vmem:[#allocation4 + $0xa0] sm:$0xff]
    %v215 = vld [vmem:[#allocation4 + $0xa8] sm:$0xff]
    %v216 = vld [vmem:[#allocation4 + $0xb0] sm:$0xff]
    %v217 = vld [vmem:[#allocation4 + $0xb8] sm:$0xff]
    %v218 = vld [vmem:[#allocation4 + $0xc8] sm:$0xff]
    %v219 = vld [vmem:[#allocation4 + $0xd0] sm:$0xff]
    %v220 = vld [vmem:[#allocation4 + $0xd8] sm:$0xff]
    %v221 = vld [vmem:[#allocation4 + $0xe0] sm:$0xff]
    %v222 = vld [vmem:[#allocation4 + $0xf0] sm:$0xff]
    %v223 = vld [vmem:[#allocation4 + $0xf8] sm:$0xff]
    %v224 = vld [vmem:[#allocation4 + $0x100] sm:$0xff]
    %v225 = vld [vmem:[#allocation4 + $0x108] sm:$0xff]
    %v226 = vld [vmem:[#allocation4 + $0x118] sm:$0xff]
    %v227 = vld [vmem:[#allocation4 + $0x120] sm:$0xff]
    %v228 = vld [vmem:[#allocation4 + $0x128] sm:$0xff]
    %v229 = vld [vmem:[#allocation4 + $0x130] sm:$0xff]
    %v230 = vld [vmem:[#allocation4 + $0x140] sm:$0xff]
    %v231 = vld [vmem:[#allocation4 + $0x148] sm:$0xff]
    %v232 = vld [vmem:[#allocation4 + $0x150] sm:$0xff]
    %v233 = vld [vmem:[#allocation4 + $0x158] sm:$0xff]
    %v234 = vld [vmem:[#allocation4 + $0x168] sm:$0xff]
    %v235 = vld [vmem:[#allocation4 + $0x170] sm:$0xff]
    %v236 = vld [vmem:[#allocation4 + $0x178] sm:$0xff]
    %v237 = vld [vmem:[#allocation4 + $0x180] sm:$0xff]
    %v238 = vld [vmem:[#allocation4 + $0x190] sm:$0xff]
    %v239 = vld [vmem:[#allocation4 + $0x198] sm:$0xff]
    %v240 = vld [vmem:[#allocation4 + $0x1a0] sm:$0xff]
    %v241 = vld [vmem:[#allocation4 + $0x1a8] sm:$0xff]
    %v242 = vld [vmem:[#allocation4 + $0x1b8] sm:$0xff]
    %v243 = vld [vmem:[#allocation4 + $0x1c0] sm:$0xff]
    %v244 = vld [vmem:[#allocation4 + $0x1c8] sm:$0xff]
    %v245 = vld [vmem:[#allocation4 + $0x1d0] sm:$0xff]
    %v246 = vld [vmem:[#allocation4 + $0x1e0] sm:$0xff]
    %v247 = vld [vmem:[#allocation4 + $0x1e8] sm:$0xff]
    %v248 = vld [vmem:[#allocation4 + $0x1f0] sm:$0xff]
    %v249 = vld [vmem:[#allocation4 + $0x1f8] sm:$0xff]
    %v250 = vld [vmem:[#allocation4 + $0x208] sm:$0xff]
    %v251 = vld [vmem:[#allocation4 + $0x210] sm:$0xff]
    %v252 = vld [vmem:[#allocation4 + $0x218] sm:$0xff]
    %v253 = vld [vmem:[#allocation4 + $0x220] sm:$0xff]
    %v254 = vld [vmem:[#allocation4 + $0x230] sm:$0xff]
    %v255 = vld [vmem:[#allocation4 + $0x238] sm:$0xff]
    %v256 = vld [vmem:[#allocation4 + $0x240] sm:$0xff]
    %v257 = vld [vmem:[#allocation4 + $0x248] sm:$0xff]
    %v258 = vld [vmem:[#allocation4 + $0x258] sm:$0xff]
    %v259 = vld [vmem:[#allocation4 + $0x260] sm:$0xff]
    %v260 = vld [vmem:[#allocation4 + $0x268] sm:$0xff]
    %v261 = vld [vmem:[#allocation4 + $0x270] sm:$0xff]
    %v262 = vld [vmem:[#allocation4 + $0x20] sm:$0xff]
    %v263 = vld [vmem:[#allocation4 + $0x48] sm:$0xff]
    %v264 = vld [vmem:[#allocation4 + $0x70] sm:$0xff]
    %v265 = vld [vmem:[#allocation4 + $0x98] sm:$0xff]
    %v266 = vld [vmem:[#allocation4 + $0xc0] sm:$0xff]
    %v267 = vld [vmem:[#allocation4 + $0xe8] sm:$0xff]
    %v268 = vld [vmem:[#allocation4 + $0x110] sm:$0xff]
    %v269 = vld [vmem:[#allocation4 + $0x138] sm:$0xff]
    %v270 = vld [vmem:[#allocation4 + $0x160] sm:$0xff]
    %v271 = vld [vmem:[#allocation4 + $0x188] sm:$0xff]
    %v272 = vld [vmem:[#allocation4 + $0x1b0] sm:$0xff]
    %v273 = vld [vmem:[#allocation4 + $0x1d8] sm:$0xff]
    %v274 = vld [vmem:[#allocation4 + $0x200] sm:$0xff]
    %v275 = vld [vmem:[#allocation4 + $0x228] sm:$0xff]
    %v276 = vld [vmem:[#allocation4 + $0x250] sm:$0xff]
    %v277 = vld [vmem:[#allocation4 + $0x278] sm:$0xff]
    %v278 = vld [vmem:[#allocation4 + $0x2a0] ss:$0 sm:$0xff]
    %v279 = vxor.u32 %v113, 2147483648
    %v280 = vmul.f32 %v279, 1.442695
    %v281 = vpow.pop %v280
    %v282 = vadd.f32 %v281, 1.0
    %v283 = vrcp.pop %v282
    %v284 = vmul.f32 %v282, %v283
    %v285 = vsub.f32 1.0, %v284
    %v286 = vmul.f32 %v283, %v285
    %v287 = vadd.f32 %v283, %v286
    %vm288 = vweird.f32 %v282
    %vm289 = vweird.f32 %v283
    %vm290 = vmor %vm288, %vm289
    %v291 = vsel %vm290, %v283, %v287
    %v292 = vand.u32 2147483647, %v282
    %vm293 = vcmp.eq.f32.partialorder %v292, 8.507059e+37
    %v294 = vand.u32 %v282, 2147483648
    %v295 = vor.u32 1.1754944e-38, %v294
    %v296 = vsel %vm293, %v295, %v291
    %v297 = vmul.f32 1.0, %v296
    %v298 = vtanh.pop %v164
    %v299 = vxor.u32 %v190, 2147483648
    %v300 = vmul.f32 %v299, 1.442695
    %v301 = vpow.pop %v300
    %v302 = vadd.f32 %v301, 1.0
    %v303 = vrcp.pop %v302
    %v304 = vmul.f32 %v302, %v303
    %v305 = vsub.f32 1.0, %v304
    %v306 = vmul.f32 %v303, %v305
    %v307 = vadd.f32 %v303, %v306
    %vm308 = vweird.f32 %v302
    %vm309 = vweird.f32 %v303
    %vm310 = vmor %vm308, %vm309
    %v311 = vsel %vm310, %v303, %v307
    %v312 = vand.u32 2147483647, %v302
    %vm313 = vcmp.eq.f32.partialorder %v312, 8.507059e+37
    %v314 = vand.u32 %v302, 2147483648
    %v315 = vor.u32 1.1754944e-38, %v314
    %v316 = vsel %vm313, %v315, %v311
    %v317 = vmul.f32 1.0, %v316
    %v318 = vmul.f32 %v297, %v298
    %v319 = vtanh.pop %v318
    %v320 = vmul.f32 %v317, %v319
    %321 = vmatpush.msra.mxu0 %v258
    %322 = vmatpush.msra.mxu0 %v254
    %323 = vmatpush.msra.mxu0 %v250
    %324 = vmatpush.msra.mxu0 %v246
    %325 = vmatpush.msra.mxu0 %v242
    %326 = vmatpush.msra.mxu0 %v238
    %327 = vmatpush.msra.mxu0 %v234
    %328 = vmatpush.msra.mxu0 %v230
    %329 = vmatpush.msra.mxu0 %v226
    %330 = vmatpush.msra.mxu0 %v222
    %331 = vmatpush.msra.mxu0 %v218
    %332 = vmatpush.msra.mxu0 %v214
    %333 = vmatpush.msra.mxu0 %v210
    %334 = vmatpush.msra.mxu0 %v206
    %335 = vmatpush.msra.mxu0 %v202
    %336 = vmatpush.msra.mxu0 %v198
    %337 = vmatmul.f32.gmra.mxu0 %v320
    %v338 = vpop.f32.mrf.mxu0
    %v339 = vadd.f32 0.0, %v338
    %340 = vdwg.mxu0
    %341 = vmatpush.msra.mxu0 %v259
    %342 = vmatpush.msra.mxu0 %v255
    %343 = vmatpush.msra.mxu0 %v251
    %344 = vmatpush.msra.mxu0 %v247
    %345 = vmatpush.msra.mxu0 %v243
    %346 = vmatpush.msra.mxu0 %v239
    %347 = vmatpush.msra.mxu0 %v235
    %348 = vmatpush.msra.mxu0 %v231
    %349 = vmatpush.msra.mxu0 %v227
    %350 = vmatpush.msra.mxu0 %v223
    %351 = vmatpush.msra.mxu0 %v219
    %352 = vmatpush.msra.mxu0 %v215
    %353 = vmatpush.msra.mxu0 %v211
    %354 = vmatpush.msra.mxu0 %v207
    %355 = vmatpush.msra.mxu0 %v203
    %356 = vmatpush.msra.mxu0 %v199
    %357 = vmatmul.f32.gmra.mxu0 %v320
    %v358 = vpop.f32.mrf.mxu0
    %v359 = vadd.f32 0.0, %v358
    %360 = vdwg.mxu0
    %361 = vmatpush.msra.mxu0 %v260
    %362 = vmatpush.msra.mxu0 %v256
    %363 = vmatpush.msra.mxu0 %v252
    %364 = vmatpush.msra.mxu0 %v248
    %365 = vmatpush.msra.mxu0 %v244
    %366 = vmatpush.msra.mxu0 %v240
    %367 = vmatpush.msra.mxu0 %v236
    %368 = vmatpush.msra.mxu0 %v232
    %369 = vmatpush.msra.mxu0 %v228
    %370 = vmatpush.msra.mxu0 %v224
    %371 = vmatpush.msra.mxu0 %v220
    %372 = vmatpush.msra.mxu0 %v216
    %373 = vmatpush.msra.mxu0 %v212
    %374 = vmatpush.msra.mxu0 %v208
    %375 = vmatpush.msra.mxu0 %v204
    %376 = vmatpush.msra.mxu0 %v200
    %377 = vmatmul.f32.gmra.mxu0 %v320
    %v378 = vpop.f32.mrf.mxu0
    %v379 = vadd.f32 0.0, %v378
    %380 = vdwg.mxu0
    %381 = vmatpush.msra.mxu0 %v261
    %382 = vmatpush.msra.mxu0 %v257
    %383 = vmatpush.msra.mxu0 %v253
    %384 = vmatpush.msra.mxu0 %v249
    %385 = vmatpush.msra.mxu0 %v245
    %386 = vmatpush.msra.mxu0 %v241
    %387 = vmatpush.msra.mxu0 %v237
    %388 = vmatpush.msra.mxu0 %v233
    %389 = vmatpush.msra.mxu0 %v229
    %390 = vmatpush.msra.mxu0 %v225
    %391 = vmatpush.msra.mxu0 %v221
    %392 = vmatpush.msra.mxu0 %v217
    %393 = vmatpush.msra.mxu0 %v213
    %394 = vmatpush.msra.mxu0 %v209
    %395 = vmatpush.msra.mxu0 %v205
    %396 = vmatpush.msra.mxu0 %v201
    %397 = vmatmul.f32.gmra.mxu0 %v320
    %v398 = vpop.f32.mrf.mxu0
    %v399 = vadd.f32 0.0, %v398
    %400 = vdwg.mxu0
    %v401 = vadd.f32 %v116, %v339
    %v402 = vadd.f32 %v141, %v359
    %v403 = vadd.f32 %v167, %v379
    %v404 = vadd.f32 %v193, %v399
    %v405 = vxor.u32 %v401, 2147483648
    %v406 = vmul.f32 %v405, 1.442695
    %v407 = vpow.pop %v406
    %v408 = vadd.f32 %v407, 1.0
    %v409 = vrcp.pop %v408
    %v410 = vmul.f32 %v408, %v409
    %v411 = vsub.f32 1.0, %v410
    %v412 = vmul.f32 %v409, %v411
    %v413 = vadd.f32 %v409, %v412
    %vm414 = vweird.f32 %v408
    %vm415 = vweird.f32 %v409
    %vm416 = vmor %vm414, %vm415
    %v417 = vsel %vm416, %v409, %v413
    %v418 = vand.u32 2147483647, %v408
    %vm419 = vcmp.eq.f32.partialorder %v418, 8.507059e+37
    %v420 = vand.u32 %v408, 2147483648
    %v421 = vor.u32 1.1754944e-38, %v420
    %v422 = vsel %vm419, %v421, %v417
    %v423 = vmul.f32 1.0, %v422
    %v424 = vtanh.pop %v403
    %v425 = vxor.u32 %v404, 2147483648
    %v426 = vmul.f32 %v425, 1.442695
    %v427 = vpow.pop %v426
    %v428 = vadd.f32 %v427, 1.0
    %v429 = vrcp.pop %v428
    %v430 = vmul.f32 %v428, %v429
    %v431 = vsub.f32 1.0, %v430
    %v432 = vmul.f32 %v429, %v431
    %v433 = vadd.f32 %v429, %v432
    %vm434 = vweird.f32 %v428
    %vm435 = vweird.f32 %v429
    %vm436 = vmor %vm434, %vm435
    %v437 = vsel %vm436, %v429, %v433
    %v438 = vand.u32 2147483647, %v428
    %vm439 = vcmp.eq.f32.partialorder %v438, 8.507059e+37
    %v440 = vand.u32 %v428, 2147483648
    %v441 = vor.u32 1.1754944e-38, %v440
    %v442 = vsel %vm439, %v441, %v437
    %v443 = vmul.f32 1.0, %v442
    %v444 = vxor.u32 %v402, 2147483648
    %v445 = vmul.f32 %v444, 1.442695
    %v446 = vpow.pop %v445
    %v447 = vadd.f32 %v446, 1.0
    %v448 = vrcp.pop %v447
    %v449 = vmul.f32 %v447, %v448
    %v450 = vsub.f32 1.0, %v449
    %v451 = vmul.f32 %v448, %v450
    %v452 = vadd.f32 %v448, %v451
    %vm453 = vweird.f32 %v447
    %vm454 = vweird.f32 %v448
    %vm455 = vmor %vm453, %vm454
    %v456 = vsel %vm455, %v448, %v452
    %v457 = vand.u32 2147483647, %v447
    %vm458 = vcmp.eq.f32.partialorder %v457, 8.507059e+37
    %v459 = vand.u32 %v447, 2147483648
    %v460 = vor.u32 1.1754944e-38, %v459
    %v461 = vsel %vm458, %v460, %v456
    %v462 = vmul.f32 1.0, %v461
    %v463 = vmul.f32 %v462, %v318
    %v464 = vmul.f32 %v423, %v424
    %v465 = vadd.f32 %v463, %v464
    %v466 = vtanh.pop %v465
    %v467 = vmul.f32 %v443, %v466
    %468 = vmatpush.msra.mxu0 %v258
    %469 = vmatpush.msra.mxu0 %v254
    %470 = vmatpush.msra.mxu0 %v250
    %471 = vmatpush.msra.mxu0 %v246
    %472 = vmatpush.msra.mxu0 %v242
    %473 = vmatpush.msra.mxu0 %v238
    %474 = vmatpush.msra.mxu0 %v234
    %475 = vmatpush.msra.mxu0 %v230
    %476 = vmatpush.msra.mxu0 %v226
    %477 = vmatpush.msra.mxu0 %v222
    %478 = vmatpush.msra.mxu0 %v218
    %479 = vmatpush.msra.mxu0 %v214
    %480 = vmatpush.msra.mxu0 %v210
    %481 = vmatpush.msra.mxu0 %v206
    %482 = vmatpush.msra.mxu0 %v202
    %483 = vmatpush.msra.mxu0 %v198
    %484 = vmatmul.f32.gmra.mxu0 %v467
    %v485 = vpop.f32.mrf.mxu0
    %v486 = vadd.f32 0.0, %v485
    %487 = vdwg.mxu0
    %488 = vmatpush.msra.mxu0 %v259
    %489 = vmatpush.msra.mxu0 %v255
    %490 = vmatpush.msra.mxu0 %v251
    %491 = vmatpush.msra.mxu0 %v247
    %492 = vmatpush.msra.mxu0 %v243
    %493 = vmatpush.msra.mxu0 %v239
    %494 = vmatpush.msra.mxu0 %v235
    %495 = vmatpush.msra.mxu0 %v231
    %496 = vmatpush.msra.mxu0 %v227
    %497 = vmatpush.msra.mxu0 %v223
    %498 = vmatpush.msra.mxu0 %v219
    %499 = vmatpush.msra.mxu0 %v215
    %500 = vmatpush.msra.mxu0 %v211
    %501 = vmatpush.msra.mxu0 %v207
    %502 = vmatpush.msra.mxu0 %v203
    %503 = vmatpush.msra.mxu0 %v199
    %504 = vmatmul.f32.gmra.mxu0 %v467
    %v505 = vpop.f32.mrf.mxu0
    %v506 = vadd.f32 0.0, %v505
    %507 = vdwg.mxu0
    %508 = vmatpush.msra.mxu0 %v260
    %509 = vmatpush.msra.mxu0 %v256
    %510 = vmatpush.msra.mxu0 %v252
    %511 = vmatpush.msra.mxu0 %v248
    %512 = vmatpush.msra.mxu0 %v244
    %513 = vmatpush.msra.mxu0 %v240
    %514 = vmatpush.msra.mxu0 %v236
    %515 = vmatpush.msra.mxu0 %v232
    %516 = vmatpush.msra.mxu0 %v228
    %517 = vmatpush.msra.mxu0 %v224
    %518 = vmatpush.msra.mxu0 %v220
    %519 = vmatpush.msra.mxu0 %v216
    %520 = vmatpush.msra.mxu0 %v212
    %521 = vmatpush.msra.mxu0 %v208
    %522 = vmatpush.msra.mxu0 %v204
    %523 = vmatpush.msra.mxu0 %v200
    %524 = vmatmul.f32.gmra.mxu0 %v467
    %v525 = vpop.f32.mrf.mxu0
    %v526 = vadd.f32 0.0, %v525
    %527 = vdwg.mxu0
    %528 = vmatpush.msra.mxu0 %v261
    %529 = vmatpush.msra.mxu0 %v257
    %530 = vmatpush.msra.mxu0 %v253
    %531 = vmatpush.msra.mxu0 %v249
    %532 = vmatpush.msra.mxu0 %v245
    %533 = vmatpush.msra.mxu0 %v241
    %534 = vmatpush.msra.mxu0 %v237
    %535 = vmatpush.msra.mxu0 %v233
    %536 = vmatpush.msra.mxu0 %v229
    %537 = vmatpush.msra.mxu0 %v225
    %538 = vmatpush.msra.mxu0 %v221
    %539 = vmatpush.msra.mxu0 %v217
    %540 = vmatpush.msra.mxu0 %v213
    %541 = vmatpush.msra.mxu0 %v209
    %542 = vmatpush.msra.mxu0 %v205
    %543 = vmatpush.msra.mxu0 %v201
    %544 = vmatmul.f32.gmra.mxu0 %v467
    %v545 = vpop.f32.mrf.mxu0
    %v546 = vadd.f32 0.0, %v545
    %547 = vdwg.mxu0
    %v548 = vadd.f32 %v119, %v486
    %v549 = vadd.f32 %v144, %v506
    %v550 = vadd.f32 %v170, %v526
    %v551 = vadd.f32 %v196, %v546
    %v552 = vxor.u32 %v548, 2147483648
    %v553 = vmul.f32 %v552, 1.442695
    %v554 = vpow.pop %v553
    %v555 = vadd.f32 %v554, 1.0
    %v556 = vrcp.pop %v555
    %v557 = vmul.f32 %v555, %v556
    %v558 = vsub.f32 1.0, %v557
    %v559 = vmul.f32 %v556, %v558
    %v560 = vadd.f32 %v556, %v559
    %vm561 = vweird.f32 %v555
    %vm562 = vweird.f32 %v556
    %vm563 = vmor %vm561, %vm562
    %v564 = vsel %vm563, %v556, %v560
    %v565 = vand.u32 2147483647, %v555
    %vm566 = vcmp.eq.f32.partialorder %v565, 8.507059e+37
    %v567 = vand.u32 %v555, 2147483648
    %v568 = vor.u32 1.1754944e-38, %v567
    %v569 = vsel %vm566, %v568, %v564
    %v570 = vmul.f32 1.0, %v569
    %v571 = vtanh.pop %v550
    %v572 = vxor.u32 %v551, 2147483648
    %v573 = vmul.f32 %v572, 1.442695
    %v574 = vpow.pop %v573
    %v575 = vadd.f32 %v574, 1.0
    %v576 = vrcp.pop %v575
    %v577 = vmul.f32 %v575, %v576
    %v578 = vsub.f32 1.0, %v577
    %v579 = vmul.f32 %v576, %v578
    %v580 = vadd.f32 %v576, %v579
    %vm581 = vweird.f32 %v575
    %vm582 = vweird.f32 %v576
    %vm583 = vmor %vm581, %vm582
    %v584 = vsel %vm583, %v576, %v580
    %v585 = vand.u32 2147483647, %v575
    %vm586 = vcmp.eq.f32.partialorder %v585, 8.507059e+37
    %v587 = vand.u32 %v575, 2147483648
    %v588 = vor.u32 1.1754944e-38, %v587
    %v589 = vsel %vm586, %v588, %v584
    %v590 = vmul.f32 1.0, %v589
    %v591 = vxor.u32 %v549, 2147483648
    %v592 = vmul.f32 %v591, 1.442695
    %v593 = vpow.pop %v592
    %v594 = vadd.f32 %v593, 1.0
    %v595 = vrcp.pop %v594
    %v596 = vmul.f32 %v594, %v595
    %v597 = vsub.f32 1.0, %v596
    %v598 = vmul.f32 %v595, %v597
    %v599 = vadd.f32 %v595, %v598
    %vm600 = vweird.f32 %v594
    %vm601 = vweird.f32 %v595
    %vm602 = vmor %vm600, %vm601
    %v603 = vsel %vm602, %v595, %v599
    %v604 = vand.u32 2147483647, %v594
    %vm605 = vcmp.eq.f32.partialorder %v604, 8.507059e+37
    %v606 = vand.u32 %v594, 2147483648
    %v607 = vor.u32 1.1754944e-38, %v606
    %v608 = vsel %vm605, %v607, %v603
    %v609 = vmul.f32 1.0, %v608
    %v610 = vmul.f32 %v609, %v465
    %v611 = vmul.f32 %v570, %v571
    %v612 = vadd.f32 %v610, %v611
    %v613 = vtanh.pop %v612
    %v614 = vmul.f32 %v590, %v613
    %615 = vmatpush.msra.mxu0 %v277
    %616 = vmatpush.msra.mxu0 %v276
    %617 = vmatpush.msra.mxu0 %v275
    %618 = vmatpush.msra.mxu0 %v274
    %619 = vmatpush.msra.mxu0 %v273
    %620 = vmatpush.msra.mxu0 %v272
    %621 = vmatpush.msra.mxu0 %v271
    %622 = vmatpush.msra.mxu0 %v270
    %623 = vmatpush.msra.mxu0 %v269
    %624 = vmatpush.msra.mxu0 %v268
    %625 = vmatpush.msra.mxu0 %v267
    %626 = vmatpush.msra.mxu0 %v266
    %627 = vmatpush.msra.mxu0 %v265
    %628 = vmatpush.msra.mxu0 %v264
    %629 = vmatpush.msra.mxu0 %v263
    %630 = vmatpush.msra.mxu0 %v262
    %631 = vmatmul.f32.gmra.mxu0 %v614
    %v632 = vpop.f32.mrf.mxu0
    %v633 = vadd.f32 %v278, %v632
    %634 = vdwg.mxu0
    %635 = vst [vmem:[%s3] sm:$0xff] %v467
    %636 = vst [vmem:[%s3 + $0x8] sm:$0xff] %v614
    %637 = vst [vmem:[%s3 + $0x10] sm:$0xff] %v633
    // Predicated region
    $region22: #{rnn_forward.1} parent=1 // pred_check
      _
    $region23: #{rnn_forward.1} parent=1 // pred_check_branch
      %639 = sbr.rel (0) target = $region25
    $region24: #{rnn_forward.1} parent=1 // pred_region
      _
    $region25: #{rnn_forward.1} parent=1 // pred_fallthru
      _
    // Predicated region
    $region26: #{rnn_forward.1} parent=1 // pred_check
      _
    $region27: #{rnn_forward.1} parent=1 // pred_check_branch
      %641 = sbr.rel (0) target = $region29
    $region28: #{rnn_forward.1} parent=1 // pred_region
      _
    $region29: #{rnn_forward.1} parent=1 // pred_fallthru
      _
    %642 = vsyncpa [#allocation3], 1
    %643 = vsyncpa [#allocation5], 1

</llo_original>
